<compile_context>
chip_gen: v7x
topology: tpu7x:2x2x1
jax: 0.10.0
libtpu: 0.0.40
codegen_flags: <defaults>
</compile_context>

<pallas_src>
import functools

import jax
import jax.numpy as jnp
from jax.experimental import pallas as pl
from jax.experimental.pallas import tpu as pltpu


def _round_up(x, m):
    return ((x + m - 1) // m) * m


def _splitter_loss_kernel(lambd_ref, node_ref, feat_ref, tgt_ref, src_ref,
                          orig_ref, out_ref, acc_ref, *, n_rows, tile_n):
    """One (tile_n, D) row-chunk of the Splitter loss.

    acc_ref is SMEM f32[2]: [sum of main log-likelihood, sum of reg NLL].
    """
    i = pl.program_id(0)

    @pl.when(i == 0)
    def _init():
        acc_ref[0] = jnp.float32(0.0)
        acc_ref[1] = jnp.float32(0.0)

    eps2 = 1e-24  # (1e-12)^2 -- guards the *squared* norm (matches F.normalize eps)

    def l2_normalize(x):
        sumsq = jnp.sum(x * x, axis=1, keepdims=True)
        return x * jax.lax.rsqrt(sumsq + eps2)

    # Mask out padded rows in the (possibly padded) last tile.
    row = i * tile_n + jax.lax.broadcasted_iota(jnp.int32, (tile_n, 1), 0)
    valid = (row < n_rows).astype(jnp.float32)                     # (tile_n, 1)

    # ---- main (centrifugal) term, in logit space -----------------------
    node_f = l2_normalize(node_ref[...].astype(jnp.float32))
    feature_f = l2_normalize(feat_ref[...].astype(jnp.float32))
    z = jnp.sum(node_f * feature_f, axis=1, keepdims=True)         # (tile_n, 1)
    t = tgt_ref[...].astype(jnp.float32)                           # (tile_n, 1)
    # t*log(sigmoid(z)) + (1-t)*log(1-sigmoid(z)) == t*z - softplus(z)
    main_ll = t * z - jnp.log(1.0 + jnp.exp(z))
    acc_ref[0] += jnp.sum(valid * main_ll)

    # ---- regularization (centripetal) term ------------------------------
    source_f = l2_normalize(src_ref[...].astype(jnp.float32))
    original_f = l2_normalize(orig_ref[...].astype(jnp.float32))
    zr = jnp.sum(source_f * original_f, axis=1, keepdims=True)     # (tile_n, 1)
    # -log(sigmoid(zr)) == softplus(-zr)
    reg_nll = jnp.log(1.0 + jnp.exp(-zr))
    acc_ref[1] += jnp.sum(valid * reg_nll)

    @pl.when(i == pl.num_programs(0) - 1)
    def _finalize():
        inv_n = 1.0 / float(n_rows)
        main_loss = -acc_ref[0] * inv_n
        reg_loss = acc_ref[1] * inv_n
        out_ref[0, 0] = main_loss + lambd_ref[0] * reg_loss


def splitter_loss(node_f, feature_f, targets, source_f, original_f, *,
                  lambd, tile_n=512):
    """Pallas implementation of Splitter.forward (returns scalar loss).

    tile_n=512 keeps the double-buffered working set (4 inputs x 2 buffers x
    tile_n x D x 4B) in the low-tens-of-MiB for D up to ~1-2K, which fits the
    default scoped VMEM on v5e/v6e (128 MiB physical) and v7x (64 MiB).
    """
    n, d = node_f.shape

    # Effective row tile: multiple of 8 (f32 sublane), no larger than needed.
    tile = min(_round_up(tile_n, 8), _round_up(n, 8))
    n_pad = _round_up(n, tile)

    def pad_rows(x):
        if n_pad == n:
            return x
        return jnp.pad(x, ((0, n_pad - n), (0, 0)))

    targets2d = targets.reshape(n, 1).astype(jnp.float32)
    node_p = pad_rows(node_f)
    feat_p = pad_rows(feature_f)
    tgt_p = pad_rows(targets2d)
    src_p = pad_rows(source_f)
    orig_p = pad_rows(original_f)
    lambd_arr = jnp.asarray([lambd], dtype=jnp.float32)

    emb_spec = pl.BlockSpec((tile, d), lambda i: (i, 0))
    tgt_spec = pl.BlockSpec((tile, 1), lambda i: (i, 0))

    kernel = functools.partial(_splitter_loss_kernel, n_rows=n, tile_n=tile)

    out = pl.pallas_call(
        kernel,
        out_shape=jax.ShapeDtypeStruct((1, 1), jnp.float32),
        grid=(n_pad // tile,),
        in_specs=[
            pl.BlockSpec(memory_space=pltpu.SMEM),   # lambd scalar
            emb_spec,                                # node_f
            emb_spec,                                # feature_f
            tgt_spec,                                # targets (column)
            emb_spec,                                # source_f
            emb_spec,                                # original_f
        ],
        out_specs=pl.BlockSpec(memory_space=pltpu.SMEM),
        scratch_shapes=[pltpu.SMEM((2,), jnp.float32)],
    )(lambd_arr, node_p, feat_p, tgt_p, src_p, orig_p)
    return out[0, 0]


def splitter_loss_ref(node_f, feature_f, targets, source_f, original_f, *, lambd):
    """Pure-JAX reference mirroring the PyTorch forward."""
    eps = 1e-12

    def norm(x):
        return x / jnp.maximum(jnp.linalg.norm(x, axis=1, keepdims=True), eps)

    s = jax.nn.sigmoid(jnp.sum(norm(node_f) * norm(feature_f), axis=1))
    main = -jnp.mean(targets * jnp.log(s) + (1 - targets) * jnp.log(1 - s))
    r = jax.nn.sigmoid(jnp.sum(norm(source_f) * norm(original_f), axis=1))
    reg = -jnp.mean(jnp.log(r))
    return main + lambd * reg


if __name__ == "__main__":
    key = jax.random.PRNGKey(0)
    k1, k2, k3, k4, k5 = jax.random.split(key, 5)

    N = 8      # number of (source, target) samples in the batch
    D = 32     # embedding dimension ("dimensions" in the module)
    LAMBD = 0.1

    node_f = jax.random.normal(k1, (N, D), dtype=jnp.float32)
    feature_f = jax.random.normal(k2, (N, D), dtype=jnp.float32)
    targets = (jax.random.uniform(k3, (N,)) > 0.5).astype(jnp.float32)
    source_f = jax.random.normal(k4, (N, D), dtype=jnp.float32)
    original_f = jax.random.normal(k5, (N, D), dtype=jnp.float32)

    loss = splitter_loss(node_f, feature_f, targets, source_f, original_f,
                         lambd=LAMBD)
    loss = jax.block_until_ready(loss)

    ref = splitter_loss_ref(node_f, feature_f, targets, source_f, original_f,
                            lambd=LAMBD)
    assert jnp.allclose(loss, ref, rtol=1e-5, atol=1e-5), (loss, ref)

    # Also exercise a multi-tile / padded-batch path (grid > 1).
    N2 = 300   # not a multiple of the tile -> exercises pad-row masking
    j1, j2, j3, j4, j5 = jax.random.split(jax.random.PRNGKey(1), 5)
    nf = jax.random.normal(j1, (N2, D), dtype=jnp.float32)
    ff = jax.random.normal(j2, (N2, D), dtype=jnp.float32)
    tg = (jax.random.uniform(j3, (N2,)) > 0.5).astype(jnp.float32)
    sf = jax.random.normal(j4, (N2, D), dtype=jnp.float32)
    of = jax.random.normal(j5, (N2, D), dtype=jnp.float32)
    loss2 = jax.block_until_ready(
        splitter_loss(nf, ff, tg, sf, of, lambd=LAMBD, tile_n=128))
    ref2 = splitter_loss_ref(nf, ff, tg, sf, of, lambd=LAMBD)
    assert jnp.allclose(loss2, ref2, rtol=1e-5, atol=1e-5), (loss2, ref2)

    print("KERNEL_OK")
</pallas_src>

<mosaic_0001>
module attributes {stable_mosaic.version = 11 : i64} {
  func.func @_splitter_loss_kernel(%arg0: i32, %arg1: memref<1xf32, #tpu.memory_space<smem>>, %arg2: memref<8x32xf32, #tpu.memory_space<vmem>>, %arg3: memref<8x32xf32, #tpu.memory_space<vmem>>, %arg4: memref<8x1xf32, #tpu.memory_space<vmem>>, %arg5: memref<8x32xf32, #tpu.memory_space<vmem>>, %arg6: memref<8x32xf32, #tpu.memory_space<vmem>>, %arg7: memref<1x1xf32, #tpu.memory_space<smem>>, %arg8: memref<2xf32, #tpu.memory_space<smem>>) attributes {dimension_semantics = [#tpu.dimension_semantics<arbitrary>], iteration_bounds = array<i64: 1>, scalar_prefetch = 0 : i64, scratch_operands = 1 : i64, tpu.core_type = #tpu.core_type<tc>, window_params = [{transform_indices = @transform_0, window_bounds = array<i64: 1>}, {transform_indices = @transform_1, window_bounds = array<i64: 8, 32>}, {transform_indices = @transform_2, window_bounds = array<i64: 8, 32>}, {transform_indices = @transform_3, window_bounds = array<i64: 8, 1>}, {transform_indices = @transform_4, window_bounds = array<i64: 8, 32>}, {transform_indices = @transform_5, window_bounds = array<i64: 8, 32>}, {transform_indices = @transform_6, window_bounds = array<i64: 1, 1>}]} {
    %c0_i32 = arith.constant 0 : i32
    %0 = arith.cmpi eq, %arg0, %c0_i32 : i32
    %1 = arith.extui %0 : i1 to i32
    %c0_i32_0 = arith.constant 0 : i32
    %2 = arith.cmpi ne, %1, %c0_i32_0 : i32
    scf.if %2 {
      %cst_30 = arith.constant 0.000000e+00 : f32
      %c0_31 = arith.constant 0 : index
      %85 = memref.load %arg8[%c0_31] : memref<2xf32, #tpu.memory_space<smem>>
      memref.store %cst_30, %arg8[%c0_31] : memref<2xf32, #tpu.memory_space<smem>>
      %cst_32 = arith.constant 0.000000e+00 : f32
      %c1_33 = arith.constant 1 : index
      %86 = memref.load %arg8[%c1_33] : memref<2xf32, #tpu.memory_space<smem>>
      memref.store %cst_32, %arg8[%c1_33] : memref<2xf32, #tpu.memory_space<smem>>
    } else {
    }
    %c8_i32 = arith.constant 8 : i32
    %3 = arith.muli %arg0, %c8_i32 : i32
    %4 = tpu.iota {dimensions = array<i32: 0>} : vector<8x1xi32>
    %5 = vector.broadcast %3 : i32 to vector<8x1xi32>
    %6 = arith.addi %5, %4 : vector<8x1xi32>
    %c8_i32_1 = arith.constant 8 : i32
    %7 = vector.broadcast %c8_i32_1 : i32 to vector<8x1xi32>
    %8 = arith.cmpi slt, %6, %7 : vector<8x1xi32>
    %9 = arith.extui %8 : vector<8x1xi1> to vector<8x1xi32>
    %10 = arith.sitofp %9 : vector<8x1xi32> to vector<8x1xf32>
    %c0 = arith.constant 0 : index
    %c0_2 = arith.constant 0 : index
    %11 = vector.load %arg2[%c0, %c0_2] : memref<8x32xf32, #tpu.memory_space<vmem>>, vector<8x32xf32>
    %12 = arith.mulf %11, %11 : vector<8x32xf32>
    %cst = arith.constant dense<0.000000e+00> : vector<8xf32>
    %13 = vector.multi_reduction <add>, %12, %cst [1] : vector<8x32xf32> to vector<8xf32>
    %14 = vector.shape_cast %13 : vector<8xf32> to vector<8x1xf32>
    %cst_3 = arith.constant 1.000000e-24 : f32
    %15 = vector.broadcast %cst_3 : f32 to vector<8x1xf32>
    %16 = arith.addf %14, %15 : vector<8x1xf32>
    %17 = math.rsqrt %16 : vector<8x1xf32>
    %18 = vector.broadcast %17 : vector<8x1xf32> to vector<8x32xf32>
    %19 = arith.mulf %11, %18 : vector<8x32xf32>
    %c0_4 = arith.constant 0 : index
    %c0_5 = arith.constant 0 : index
    %20 = vector.load %arg3[%c0_4, %c0_5] : memref<8x32xf32, #tpu.memory_space<vmem>>, vector<8x32xf32>
    %21 = arith.mulf %20, %20 : vector<8x32xf32>
    %cst_6 = arith.constant dense<0.000000e+00> : vector<8xf32>
    %22 = vector.multi_reduction <add>, %21, %cst_6 [1] : vector<8x32xf32> to vector<8xf32>
    %23 = vector.shape_cast %22 : vector<8xf32> to vector<8x1xf32>
    %cst_7 = arith.constant 1.000000e-24 : f32
    %24 = vector.broadcast %cst_7 : f32 to vector<8x1xf32>
    %25 = arith.addf %23, %24 : vector<8x1xf32>
    %26 = math.rsqrt %25 : vector<8x1xf32>
    %27 = vector.broadcast %26 : vector<8x1xf32> to vector<8x32xf32>
    %28 = arith.mulf %20, %27 : vector<8x32xf32>
    %29 = arith.mulf %19, %28 : vector<8x32xf32>
    %cst_8 = arith.constant dense<0.000000e+00> : vector<8xf32>
    %30 = vector.multi_reduction <add>, %29, %cst_8 [1] : vector<8x32xf32> to vector<8xf32>
    %31 = vector.shape_cast %30 : vector<8xf32> to vector<8x1xf32>
    %c0_9 = arith.constant 0 : index
    %c0_10 = arith.constant 0 : index
    %32 = vector.load %arg4[%c0_9, %c0_10] : memref<8x1xf32, #tpu.memory_space<vmem>>, vector<8x1xf32>
    %33 = arith.mulf %32, %31 : vector<8x1xf32>
    %34 = math.exp %31 : vector<8x1xf32>
    %cst_11 = arith.constant 1.000000e+00 : f32
    %35 = vector.broadcast %cst_11 : f32 to vector<8x1xf32>
    %36 = arith.addf %35, %34 : vector<8x1xf32>
    %37 = math.log %36 : vector<8x1xf32>
    %38 = arith.subf %33, %37 : vector<8x1xf32>
    %c0_12 = arith.constant 0 : index
    %39 = memref.load %arg8[%c0_12] : memref<2xf32, #tpu.memory_space<smem>>
    %40 = arith.mulf %10, %38 : vector<8x1xf32>
    %41 = vector.shape_cast %40 : vector<8x1xf32> to vector<1x8x1xf32>
    %cst_13 = arith.constant dense<0.000000e+00> : vector<1xf32>
    %42 = vector.multi_reduction <add>, %41, %cst_13 [1, 2] : vector<1x8x1xf32> to vector<1xf32>
    %43 = vector.shape_cast %42 : vector<1xf32> to vector<1x1x1xf32>
    %44 = vector.extract %43[0, 0, 0] : f32 from vector<1x1x1xf32>
    %45 = arith.addf %39, %44 : f32
    %c0_14 = arith.constant 0 : index
    %46 = memref.load %arg8[%c0_14] : memref<2xf32, #tpu.memory_space<smem>>
    memref.store %45, %arg8[%c0_14] : memref<2xf32, #tpu.memory_space<smem>>
    %c0_15 = arith.constant 0 : index
    %c0_16 = arith.constant 0 : index
    %47 = vector.load %arg5[%c0_15, %c0_16] : memref<8x32xf32, #tpu.memory_space<vmem>>, vector<8x32xf32>
    %48 = arith.mulf %47, %47 : vector<8x32xf32>
    %cst_17 = arith.constant dense<0.000000e+00> : vector<8xf32>
    %49 = vector.multi_reduction <add>, %48, %cst_17 [1] : vector<8x32xf32> to vector<8xf32>
    %50 = vector.shape_cast %49 : vector<8xf32> to vector<8x1xf32>
    %cst_18 = arith.constant 1.000000e-24 : f32
    %51 = vector.broadcast %cst_18 : f32 to vector<8x1xf32>
    %52 = arith.addf %50, %51 : vector<8x1xf32>
    %53 = math.rsqrt %52 : vector<8x1xf32>
    %54 = vector.broadcast %53 : vector<8x1xf32> to vector<8x32xf32>
    %55 = arith.mulf %47, %54 : vector<8x32xf32>
    %c0_19 = arith.constant 0 : index
    %c0_20 = arith.constant 0 : index
    %56 = vector.load %arg6[%c0_19, %c0_20] : memref<8x32xf32, #tpu.memory_space<vmem>>, vector<8x32xf32>
    %57 = arith.mulf %56, %56 : vector<8x32xf32>
    %cst_21 = arith.constant dense<0.000000e+00> : vector<8xf32>
    %58 = vector.multi_reduction <add>, %57, %cst_21 [1] : vector<8x32xf32> to vector<8xf32>
    %59 = vector.shape_cast %58 : vector<8xf32> to vector<8x1xf32>
    %cst_22 = arith.constant 1.000000e-24 : f32
    %60 = vector.broadcast %cst_22 : f32 to vector<8x1xf32>
    %61 = arith.addf %59, %60 : vector<8x1xf32>
    %62 = math.rsqrt %61 : vector<8x1xf32>
    %63 = vector.broadcast %62 : vector<8x1xf32> to vector<8x32xf32>
    %64 = arith.mulf %56, %63 : vector<8x32xf32>
    %65 = arith.mulf %55, %64 : vector<8x32xf32>
    %cst_23 = arith.constant dense<0.000000e+00> : vector<8xf32>
    %66 = vector.multi_reduction <add>, %65, %cst_23 [1] : vector<8x32xf32> to vector<8xf32>
    %67 = vector.shape_cast %66 : vector<8xf32> to vector<8x1xf32>
    %cst_24 = arith.constant 0.000000e+00 : f32
    %68 = vector.broadcast %cst_24 : f32 to vector<8x1xf32>
    %69 = arith.subf %68, %67 : vector<8x1xf32>
    %70 = math.exp %69 : vector<8x1xf32>
    %cst_25 = arith.constant 1.000000e+00 : f32
    %71 = vector.broadcast %cst_25 : f32 to vector<8x1xf32>
    %72 = arith.addf %71, %70 : vector<8x1xf32>
    %73 = math.log %72 : vector<8x1xf32>
    %c1 = arith.constant 1 : index
    %74 = memref.load %arg8[%c1] : memref<2xf32, #tpu.memory_space<smem>>
    %75 = arith.mulf %10, %73 : vector<8x1xf32>
    %76 = vector.shape_cast %75 : vector<8x1xf32> to vector<1x8x1xf32>
    %cst_26 = arith.constant dense<0.000000e+00> : vector<1xf32>
    %77 = vector.multi_reduction <add>, %76, %cst_26 [1, 2] : vector<1x8x1xf32> to vector<1xf32>
    %78 = vector.shape_cast %77 : vector<1xf32> to vector<1x1x1xf32>
    %79 = vector.extract %78[0, 0, 0] : f32 from vector<1x1x1xf32>
    %80 = arith.addf %74, %79 : f32
    %c1_27 = arith.constant 1 : index
    %81 = memref.load %arg8[%c1_27] : memref<2xf32, #tpu.memory_space<smem>>
    memref.store %80, %arg8[%c1_27] : memref<2xf32, #tpu.memory_space<smem>>
    %c0_i32_28 = arith.constant 0 : i32
    %82 = arith.cmpi eq, %arg0, %c0_i32_28 : i32
    %83 = arith.extui %82 : i1 to i32
    %c0_i32_29 = arith.constant 0 : i32
    %84 = arith.cmpi ne, %83, %c0_i32_29 : i32
    scf.if %84 {
      %c0_30 = arith.constant 0 : index
      %85 = memref.load %arg8[%c0_30] : memref<2xf32, #tpu.memory_space<smem>>
      %cst_31 = arith.constant 0.000000e+00 : f32
      %86 = arith.subf %cst_31, %85 : f32
      %cst_32 = arith.constant 1.250000e-01 : f32
      %87 = arith.mulf %86, %cst_32 : f32
      %c1_33 = arith.constant 1 : index
      %88 = memref.load %arg8[%c1_33] : memref<2xf32, #tpu.memory_space<smem>>
      %cst_34 = arith.constant 1.250000e-01 : f32
      %89 = arith.mulf %88, %cst_34 : f32
      %c0_35 = arith.constant 0 : index
      %90 = memref.load %arg1[%c0_35] : memref<1xf32, #tpu.memory_space<smem>>
      %91 = arith.mulf %90, %89 : f32
      %92 = arith.addf %87, %91 : f32
      %c0_36 = arith.constant 0 : index
      %c0_37 = arith.constant 0 : index
      %93 = memref.load %arg7[%c0_36, %c0_37] : memref<1x1xf32, #tpu.memory_space<smem>>
      memref.store %92, %arg7[%c0_36, %c0_37] : memref<1x1xf32, #tpu.memory_space<smem>>
    } else {
    }
    return
  }
  func.func @transform_0(%arg0: i32) -> i32 {
    %c0_i32 = arith.constant 0 : i32
    %c0_i32_0 = arith.constant 0 : i32
    return %c0_i32 : i32
  }
  func.func @transform_1(%arg0: i32) -> (i32, i32) {
    %c0_i32 = arith.constant 0 : i32
    %c0_i32_0 = arith.constant 0 : i32
    return %arg0, %c0_i32 : i32, i32
  }
  func.func @transform_2(%arg0: i32) -> (i32, i32) {
    %c0_i32 = arith.constant 0 : i32
    %c0_i32_0 = arith.constant 0 : i32
    return %arg0, %c0_i32 : i32, i32
  }
  func.func @transform_3(%arg0: i32) -> (i32, i32) {
    %c0_i32 = arith.constant 0 : i32
    %c0_i32_0 = arith.constant 0 : i32
    return %arg0, %c0_i32 : i32, i32
  }
  func.func @transform_4(%arg0: i32) -> (i32, i32) {
    %c0_i32 = arith.constant 0 : i32
    %c0_i32_0 = arith.constant 0 : i32
    return %arg0, %c0_i32 : i32, i32
  }
  func.func @transform_5(%arg0: i32) -> (i32, i32) {
    %c0_i32 = arith.constant 0 : i32
    %c0_i32_0 = arith.constant 0 : i32
    return %arg0, %c0_i32 : i32, i32
  }
  func.func @transform_6(%arg0: i32) -> (i32, i32) {
    %c0_i32 = arith.constant 0 : i32
    %c0_i32_0 = arith.constant 0 : i32
    %c0_i32_1 = arith.constant 0 : i32
    return %c0_i32, %c0_i32_0 : i32, i32
  }
}

</mosaic_0001>

<llo_original>
// kernel: tpu_custom_call.1
$region0: #{tpu_custom_call.1}
  #allocation0 [shape = 'u32[]', space=smem, size = 0x4, offset = 0x4, fixed_abs, tag = 'smem constant byte address 0x4 - core index']
  #allocation1 [shape = 'u32[144,128]{1,0:T(1,128)}', space=vmem, size = 0x12000, scoped, tag = 'internal scratch']
  #allocation2 [shape = 'f32[2]{0:T(128)}', space=smem, size = 0x200, scoped, tag = 'scratch operand']
  #allocation3 [shape = 'f32[1]{0:T(128)S(6)}', space=smem, size = 0x200, scoped, tag = 'scoped memory for tpu_custom_call.1']
  %s0 = inlined_call_operand.<no memory space> [shape: f32[1], index: 0, kind: input, shape index: {}]
  %s1 = inlined_call_operand.vmem [shape: f32[8,32], index: 1, kind: input, shape index: {}]
  %s2 = inlined_call_operand.vmem [shape: f32[8,32], index: 2, kind: input, shape index: {}]
  %s3 = inlined_call_operand.vmem [shape: f32[8,1], index: 3, kind: input, shape index: {}]
  %s4 = inlined_call_operand.vmem [shape: f32[8,32], index: 4, kind: input, shape index: {}]
  %s5 = inlined_call_operand.hbm [shape: f32[8,32], index: 5, kind: input, shape index: {}]
  %s6 = inlined_call_operand.hbm [shape: f32[1,1], index: 6, kind: output, shape index: {}]
  %s7 = sld [smem:[#allocation0]]
  $region46: #{tpu_custom_call.1} parent=0
    _
  %s9 = ssub.s32 1, %s7
  %s10 = scalar_select 0, %s9, %s7
  %11 = sst [smem:[#allocation3]] %s0
  $region1: #{tpu_custom_call.1} parent=0
    #allocation4 [shape = 'u8[4096]{0}', space=vmem, size = 0x1000, scoped, tag = 'input window, operand 5, single buffered']
    #allocation5 [shape = 's32[1]{0}', space=sflag, size = 0x4, scoped, tag = 'scoped memory for tpu_custom_call.1']
    #allocation6 [shape = 's32[1]{0}', space=sflag, size = 0x4, scoped, tag = 'scoped memory for tpu_custom_call.1']
    #allocation7 [shape = 'u8[512]{0}', space=smem, size = 0x200, scoped, tag = 'output window, operand 0, single buffered']
    %12 = vsyncpa [#allocation5], 0
    %13 = vsyncpa [#allocation6], 0
    // Predicated region
    $region2: #{tpu_custom_call.1} parent=1 // pred_check
      _
    $region3: #{tpu_custom_call.1} parent=1 // pred_check_branch
      %15 = sbr.rel (0) target = $region5
    $region4: #{tpu_custom_call.1} parent=1 // pred_region
      _
    $region5: #{tpu_custom_call.1} parent=1 // pred_fallthru
      _
    // Predicated region
    $region6: #{tpu_custom_call.1} parent=1 // pred_check
      _
    $region7: #{tpu_custom_call.1} parent=1 // pred_check_branch
      %17 = sbr.rel (0) target = $region9
    $region8: #{tpu_custom_call.1} parent=1 // pred_region
      _
    $region9: #{tpu_custom_call.1} parent=1 // pred_fallthru
      _
    // Predicated region
    $region10: #{tpu_custom_call.1} parent=1 // pred_check
      _
    $region11: #{tpu_custom_call.1} parent=1 // pred_check_branch
      %19 = sbr.rel (0) target = $region13
    $region12: #{tpu_custom_call.1} parent=1 // pred_region
      _
    $region13: #{tpu_custom_call.1} parent=1 // pred_fallthru
      _
    // Predicated region
    $region14: #{tpu_custom_call.1} parent=1 // pred_check
      _
    $region15: #{tpu_custom_call.1} parent=1 // pred_check_branch
      %21 = sbr.rel (0) target = $region17
    $region16: #{tpu_custom_call.1} parent=1 // pred_region
      _
    $region17: #{tpu_custom_call.1} parent=1 // pred_fallthru
      _
    // Predicated region
    $region18: #{tpu_custom_call.1} parent=1 // pred_check
      _
    $region19: #{tpu_custom_call.1} parent=1 // pred_check_branch
      %23 = sbr.rel (0) target = $region21
    $region20: #{tpu_custom_call.1} parent=1 // pred_region
      _
    $region21: #{tpu_custom_call.1} parent=1 // pred_fallthru
      _
    // Predicated region
    $region22: #{tpu_custom_call.1} parent=1 // pred_check
      _
    $region23: #{tpu_custom_call.1} parent=1 // pred_check_branch
      %25 = sbr.rel (0) target = $region25
    $region24: #{tpu_custom_call.1} parent=1 // pred_region
      %s27 = ssub.s32 128, 128
      %28 = vsyncadd [#allocation5], %s27
      %s30 = sshll.u32 [#allocation4], 4
      %s31 = int_to_ptr.vmem [resolvable:$true] %s30
      %33 = dma.hbm_to_vmem [thread:$0]  %s5, 128, %s31, [#allocation5]
    $region25: #{tpu_custom_call.1} parent=1 // pred_fallthru
      _
    // Predicated region
    $region26: #{tpu_custom_call.1} parent=1 // pred_check
      _
    $region27: #{tpu_custom_call.1} parent=1 // pred_check_branch
      %35 = sbr.rel (0) target = $region29
    $region28: #{tpu_custom_call.1} parent=1 // pred_region
      %36 = dma.done [#allocation5], 128
    $region29: #{tpu_custom_call.1} parent=1 // pred_fallthru
      _
    %p37 = scmp.eq.s32.totalorder 0, 0
    // Predicated region
    $region30: #{tpu_custom_call.1} parent=1 // pred_check
      %p38 = pneg %p37
    $region31: #{tpu_custom_call.1} parent=1 // pred_check_branch
      %40 = sbr.rel (%p38) target = $region33
    $region32: #{tpu_custom_call.1} parent=1 // pred_region
      %s41 = scalar_lea.smem [#allocation2], 0
      %42 = sst [smem:[%s41]] 0.0
      %s43 = scalar_lea.smem [#allocation2], 1
      %44 = sst [smem:[%s43]] 0.0
    $region33: #{tpu_custom_call.1} parent=1 // pred_fallthru
      _
    %s45 = smul.u32 0, 8
    %v46 = vlaneseq
    %v47 = vshrl.u32 %v46, 7
    %v48 = vstv %s45
    %v49 = vadd.s32 %v48, %v47
    %vm50 = vcmp.lt.s32.totalorder %v49, 8
    %v51 = vsel %vm50, 1, 0
    %v52 = vcvt.s32.f32 %v51
    %v53 = vld [vmem:[%s1] sm:$0xff]
    %v54 = vmul.f32 %v53, %v53
    %vm55 = vcmask 261120
    %v56 = vsel %vm55, %v54, 0.0
    %57 = vadd.xlane.f32.xlu0 %v56
    %v58 = vpop.xlane.xlu0 %57
    %v59 = vadd.f32 %v58, 1e-24
    %v60 = vrsqrt.pop %v59
    %v61 = vmul.f32 %v53, %v60
    %v62 = vld [vmem:[%s2] sm:$0xff]
    %v63 = vmul.f32 %v62, %v62
    %v64 = vsel %vm55, %v63, 0.0
    %65 = vadd.xlane.f32.xlu0 %v64
    %v66 = vpop.xlane.xlu0 %65
    %v67 = vadd.f32 %v66, 1e-24
    %v68 = vrsqrt.pop %v67
    %v69 = vmul.f32 %v62, %v68
    %v70 = vmul.f32 %v61, %v69
    %v71 = vsel %vm55, %v70, 0.0
    %72 = vadd.xlane.f32.xlu0 %v71
    %v73 = vpop.xlane.xlu0 %72
    %v74 = vld [vmem:[%s3] sm:$0xff]
    %v75 = vmul.f32 %v74, %v73
    %v76 = vmul.f32 %v73, 1.442695
    %v77 = vpow.pop %v76
    %v78 = vadd.f32 %v77, 1.0
    %v79 = vlog2.pop %v78
    %v80 = vmul.f32 %v79, 0.6931472
    %v81 = vsub.f32 %v75, %v80
    %s82 = sld [smem:[#allocation2]]
    %v83 = vmul.f32 %v52, %v81
    %vm84 = vcmask 7168
    %v85 = vsel %vm84, %v83, 0.0
    %86 = vadd.xlane.f32.xlu0 %v85
    %v87 = vpop.xlane.xlu0 %86
    %v88 = vrot.slane %v87, 4
    %v89 = vadd.f32 %v87, %v88
    %v90 = vrot.slane %v89, 2
    %v91 = vadd.f32 %v89, %v90
    %v92 = vrot.slane %v91, 1
    %v93 = vadd.f32 %v91, %v92
    %s94 = vtos %v93
    %s95 = sadd.f32 %s82, %s94
    %s96 = scalar_lea.smem [#allocation2], 0
    %97 = sst [smem:[%s96]] %s95
    %v98 = vld [vmem:[%s4] sm:$0xff]
    %v99 = vmul.f32 %v98, %v98
    %v100 = vsel %vm55, %v99, 0.0
    %101 = vadd.xlane.f32.xlu0 %v100
    %v102 = vpop.xlane.xlu0 %101
    %v103 = vadd.f32 %v102, 1e-24
    %v104 = vrsqrt.pop %v103
    %v105 = vmul.f32 %v98, %v104
    %v106 = vld [vmem:[#allocation4] sm:$0xff]
    %v107 = vmul.f32 %v106, %v106
    %v108 = vsel %vm55, %v107, 0.0
    %109 = vadd.xlane.f32.xlu0 %v108
    %v110 = vpop.xlane.xlu0 %109
    %v111 = vadd.f32 %v110, 1e-24
    %v112 = vrsqrt.pop %v111
    %v113 = vmul.f32 %v106, %v112
    %v114 = vmul.f32 %v105, %v113
    %v115 = vsel %vm55, %v114, 0.0
    %116 = vadd.xlane.f32.xlu0 %v115
    %v117 = vpop.xlane.xlu0 %116
    %v118 = vsub.f32 0.0, %v117
    %v119 = vmul.f32 %v118, 1.442695
    %v120 = vpow.pop %v119
    %v121 = vadd.f32 %v120, 1.0
    %v122 = vlog2.pop %v121
    %v123 = vmul.f32 %v122, 0.6931472
    %s124 = sld [smem:[#allocation2 + $0x1]]
    %v125 = vmul.f32 %v52, %v123
    %v126 = vsel %vm84, %v125, 0.0
    %127 = vadd.xlane.f32.xlu0 %v126
    %v128 = vpop.xlane.xlu0 %127
    %v129 = vrot.slane %v128, 4
    %v130 = vadd.f32 %v128, %v129
    %v131 = vrot.slane %v130, 2
    %v132 = vadd.f32 %v130, %v131
    %v133 = vrot.slane %v132, 1
    %v134 = vadd.f32 %v132, %v133
    %s135 = vtos %v134
    %s136 = sadd.f32 %s124, %s135
    %s137 = scalar_lea.smem [#allocation2], 1
    %138 = sst [smem:[%s137]] %s136
    // Predicated region
    $region34: #{tpu_custom_call.1} parent=1 // pred_check
      %p139 = pneg %p37
    $region35: #{tpu_custom_call.1} parent=1 // pred_check_branch
      %141 = sbr.rel (%p139) target = $region37
    $region36: #{tpu_custom_call.1} parent=1 // pred_region
      %s142 = sld [smem:[#allocation2]]
      %s143 = ssub.f32 0.0, %s142
      %s144 = smul.f32 %s143, 0.125
      %s145 = sld [smem:[#allocation2 + $0x1]]
      %s146 = smul.f32 %s145, 0.125
      %s147 = sld [smem:[#allocation3]]
      %s148 = smul.f32 %s147, %s146
      %s149 = sadd.f32 %s144, %s148
      %s150 = scalar_lea.smem [#allocation7], 0
      %151 = sst [smem:[%s150]] %s149
    $region37: #{tpu_custom_call.1} parent=1 // pred_fallthru
      _
    // Predicated region
    $region38: #{tpu_custom_call.1} parent=1 // pred_check
      _
    $region39: #{tpu_custom_call.1} parent=1 // pred_check_branch
      %153 = sbr.rel (0) target = $region41
    $region40: #{tpu_custom_call.1} parent=1 // pred_region
      %s155 = ssub.s32 16, 16
      %156 = vsyncadd [#allocation6], %s155
      %159 = dma.smem_to_hbm [#allocation7], 16, %s6, [#allocation6]
    $region41: #{tpu_custom_call.1} parent=1 // pred_fallthru
      _
    // Predicated region
    $region42: #{tpu_custom_call.1} parent=1 // pred_check
      _
    $region43: #{tpu_custom_call.1} parent=1 // pred_check_branch
      %161 = sbr.rel (0) target = $region45
    $region44: #{tpu_custom_call.1} parent=1 // pred_region
      %162 = dma.done [#allocation6], 16
    $region45: #{tpu_custom_call.1} parent=1 // pred_fallthru
      _
    %163 = sfence
    %164 = vsyncpa [#allocation5], 1
    %165 = vsyncpa [#allocation6], 1

</llo_original>
